<compile_context>
chip_gen: v6e
topology: v6e:2x2x1
jax: 0.10.0
libtpu: 0.0.40
codegen_flags: <defaults>
</compile_context>

<pallas_src>
import math

import jax
import jax.numpy as jnp
from jax.experimental import pallas as pl
from jax.experimental.pallas import tpu as pltpu

_LANES = 128
_SUBLANES = 8
_SLAB = _LANES * _SUBLANES  # 1024 elements


def _target_block_bytes():
    """Per-input block-size target, sized per chip generation."""
    # 2 MiB per input: 3 arrays x 2 pipeline buffers = 12 MiB, inside v5e's
    # 16 MiB scoped-VMEM default and already ~roofline at ~0.8 TB/s HBM.
    base = 2 << 20
    try:
        name = str(getattr(pltpu.get_tpu_info(), "chip_version", "")).lower()
        # v6e/v7x stream 1.4-3.2 TB/s; 4 MiB blocks (24 MiB total w/ double
        # buffering) amortize the fixed ~0.35us per-grid-step overhead and
        # still fit the 32 MiB scoped-VMEM default on both.
        if any(tag in name for tag in ("v6", "v7", "6e", "7x")):
            base = 4 << 20
    except Exception:
        pass
    return base


def _sub_kernel(x_ref, y_ref, o_ref):
    # Elementwise sub on the current VMEM tile; promote in-register (VPU cast)
    # instead of materializing widened copies in HBM.
    o_ref[...] = x_ref[...].astype(o_ref.dtype) - y_ref[...].astype(o_ref.dtype)


def _scalar_rhs_sub_kernel(d_ref, s_ref, o_ref):
    # dense - broadcast scalar; the scalar is a resident (1,1) VMEM block.
    o_ref[...] = d_ref[...].astype(o_ref.dtype) - s_ref[...].astype(o_ref.dtype)


def _scalar_lhs_sub_kernel(d_ref, s_ref, o_ref):
    # broadcast scalar - dense.
    o_ref[...] = s_ref[...].astype(o_ref.dtype) - d_ref[...].astype(o_ref.dtype)


def _pick_tile_rows(rows, row_bytes):
    """Rows per block.  None => whole slab fits in one block (no grid)."""
    target = _target_block_bytes() // row_bytes
    target = max(_SUBLANES, (target // _SUBLANES) * _SUBLANES)
    if rows <= target:
        return None
    # Prefer a tile that divides rows exactly (every step a full, unmasked
    # (tile_r, 128) DMA); otherwise accept one masked partial tail block
    # rather than shrinking to pathologically small tiles.
    t = target
    while t > target // 2:
        if rows % t == 0:
            return t
        t -= _SUBLANES
    return target


def _launch_slab(kernel, dense2, other, other_block, out_dtype):
    """Run `kernel` over a lane-dense (rows, 128) slab `dense2`.

    `other` is either a second full (rows, 128) slab (other_block=None) or a
    (1, 1) broadcast-scalar block (other_block=(1, 1)) kept resident in VMEM.
    """
    rows = dense2.shape[0]
    widest = max(dense2.dtype.itemsize, other.dtype.itemsize,
                 jnp.dtype(out_dtype).itemsize)
    tile_r = _pick_tile_rows(rows, _LANES * widest)
    out_shape = jax.ShapeDtypeStruct((rows, _LANES), out_dtype)

    if tile_r is None:
        # Single-block launch: no grid, full-array blocks, one DMA in / out.
        # This is the hot path for small shapes like (2, 4, 16, 16).
        return pl.pallas_call(kernel, out_shape=out_shape)(dense2, other)

    dense_spec = pl.BlockSpec((tile_r, _LANES), lambda i: (i, 0))
    if other_block is None:                       # second streamed operand
        other_spec = pl.BlockSpec((tile_r, _LANES), lambda i: (i, 0))
    else:                                         # resident broadcast block
        other_spec = pl.BlockSpec(other_block, lambda i: (0, 0))

    return pl.pallas_call(
        kernel,
        out_shape=out_shape,
        grid_spec=pltpu.PrefetchScalarGridSpec(
            num_scalar_prefetch=0,
            grid=(pl.cdiv(rows, tile_r),),
            in_specs=[dense_spec, other_spec],
            out_specs=pl.BlockSpec((tile_r, _LANES), lambda i: (i, 0)),
        ),
        # "parallel": v7x's second TensorCore picks up grid steps (each step
        # streams >= ~1-2 MiB per input, so the split pays off); on v5e/v6e
        # (single TC) this is a no-op.
        compiler_params=pltpu.CompilerParams(
            dimension_semantics=("parallel",)),
    )(dense2, other)


def pallas_sub(x, y):
    """z = x - y with NumPy/torch-style broadcasting and type promotion."""
    out_shape = jnp.broadcast_shapes(x.shape, y.shape)
    out_dtype = jnp.result_type(x.dtype, y.dtype)
    total = math.prod(out_shape)

    if total == 0:
        return jnp.zeros(out_shape, out_dtype)

    x_full = x.shape == out_shape
    y_full = y.shape == out_shape

    # --- scalar-broadcast fast path: stream only the dense operand ----------
    if total % _LANES == 0 and total > 1:
        rows = total // _LANES
        if x_full and (not y_full) and y.size == 1:
            z2 = _launch_slab(_scalar_rhs_sub_kernel, x.reshape(rows, _LANES),
                              y.reshape(1, 1), (1, 1), out_dtype)
            return z2.reshape(out_shape)
        if y_full and (not x_full) and x.size == 1:
            z2 = _launch_slab(_scalar_lhs_sub_kernel, y.reshape(rows, _LANES),
                              x.reshape(1, 1), (1, 1), out_dtype)
            return z2.reshape(out_shape)

    # General broadcasting: materialize the (narrow-dtype) broadcast operand.
    # TODO(synk): stream non-scalar broadcast operands (e.g. per-channel bias)
    # through their own pinned BlockSpec instead of materializing in HBM.
    xb = x if x_full else jnp.broadcast_to(x, out_shape)
    yb = y if y_full else jnp.broadcast_to(y, out_shape)

    if total % _LANES == 0:
        # Hot path: exact lane-dense (rows, 128) slab — no padding, full
        # unmasked 128-lane stores.
        rows = total // _LANES
        z2 = _launch_slab(_sub_kernel, xb.reshape(rows, _LANES),
                          yb.reshape(rows, _LANES), None, out_dtype)
        return z2.reshape(out_shape)

    # Lane-misaligned element count: run the slab kernel on the 1024-aligned
    # prefix (contiguous slice + reshape, no full-tensor pads) and finish the
    # < 1024-element tail with plain XLA.
    x1 = xb.reshape(total)
    y1 = yb.reshape(total)
    prefix = (total // _SLAB) * _SLAB
    if prefix == 0:
        # < 1024 elements: one tiny full-array block; pure launch overhead at
        # this size on every generation.
        z2 = pl.pallas_call(
            _sub_kernel,
            out_shape=jax.ShapeDtypeStruct((1, total), out_dtype),
        )(x1.reshape(1, total), y1.reshape(1, total))
        return z2.reshape(out_shape)

    zp = _launch_slab(_sub_kernel,
                      x1[:prefix].reshape(prefix // _LANES, _LANES),
                      y1[:prefix].reshape(prefix // _LANES, _LANES),
                      None, out_dtype).reshape(prefix)
    zt = x1[prefix:].astype(out_dtype) - y1[prefix:].astype(out_dtype)
    return jnp.concatenate([zp, zt]).reshape(out_shape)


if __name__ == "__main__":
    key = jax.random.PRNGKey(0)
    kx, ky = jax.random.split(key)
    # NCHW inputs, small shapes (batch=2, channels=4, spatial=16x16).
    x = jax.random.normal(kx, (2, 4, 16, 16), dtype=jnp.float32)
    y = jax.random.normal(ky, (2, 4, 16, 16), dtype=jnp.float32)

    z = pallas_sub(x, y)
    z = jax.block_until_ready(z)

    ref = x - y
    assert z.shape == ref.shape and z.dtype == ref.dtype
    assert jnp.allclose(z, ref, atol=1e-6, rtol=1e-6)
    print("KERNEL_OK")
</pallas_src>

<mosaic_0001>
module attributes {stable_mosaic.version = 11 : i64} {
  func.func @_sub_kernel(%arg0: memref<16x128xf32, #tpu.memory_space<vmem>>, %arg1: memref<16x128xf32, #tpu.memory_space<vmem>>, %arg2: memref<16x128xf32, #tpu.memory_space<vmem>>) attributes {dimension_semantics = [], scalar_prefetch = 0 : i64, scratch_operands = 0 : i64, tpu.core_type = #tpu.core_type<tc>} {
    %c0 = arith.constant 0 : index
    %c0_0 = arith.constant 0 : index
    %0 = vector.load %arg0[%c0, %c0_0] : memref<16x128xf32, #tpu.memory_space<vmem>>, vector<16x128xf32>
    %c0_1 = arith.constant 0 : index
    %c0_2 = arith.constant 0 : index
    %1 = vector.load %arg1[%c0_1, %c0_2] : memref<16x128xf32, #tpu.memory_space<vmem>>, vector<16x128xf32>
    %2 = arith.subf %0, %1 : vector<16x128xf32>
    %c0_3 = arith.constant 0 : index
    %c0_4 = arith.constant 0 : index
    %3 = vector.load %arg2[%c0_3, %c0_4] : memref<16x128xf32, #tpu.memory_space<vmem>>, vector<16x128xf32>
    tpu.vector_store %arg2[%c0_3, %c0_4], %2 {strides = array<i32>} : memref<16x128xf32, #tpu.memory_space<vmem>>, vector<16x128xf32>,
    return
  }
}

</mosaic_0001>

<llo_original>
// kernel: tpu_custom_call.1
$region0: #{tpu_custom_call.1}
  #allocation0 [shape = 'u32[]', space=smem, size = 0x4, offset = 0x4, fixed_abs, tag = 'smem constant byte address 0x4 - core index']
  #allocation1 [shape = 'u32[144,128]{1,0:T(1,128)}', space=vmem, size = 0x12000, scoped, tag = 'internal scratch']
  %s0 = inlined_call_operand.hbm [shape: f32[16,128], index: 0, kind: input, shape index: {}]
  %s1 = inlined_call_operand.hbm [shape: f32[16,128], index: 1, kind: input, shape index: {}]
  %s2 = inlined_call_operand.hbm [shape: f32[16,128], index: 2, kind: output, shape index: {}]
  %s3 = sld [smem:[#allocation0]]
  $region26: #{tpu_custom_call.1} parent=0
    _
  %s5 = ssub.s32 1, %s3
  %s6 = scalar_select 0, %s5, %s3
  $region1: #{tpu_custom_call.1} parent=0
    #allocation2 [shape = 'u8[8192]{0}', space=vmem, size = 0x2000, scoped, tag = 'input window, operand 0, single buffered']
    #allocation3 [shape = 's32[1]{0}', space=sflag, size = 0x4, scoped, tag = 'scoped memory for tpu_custom_call.1']
    #allocation4 [shape = 's32[1]{0}', space=sflag, size = 0x4, scoped, tag = 'scoped memory for tpu_custom_call.1']
    #allocation5 [shape = 'u8[8192]{0}', space=vmem, size = 0x2000, scoped, tag = 'input window, operand 1, single buffered']
    #allocation6 [shape = 's32[1]{0}', space=sflag, size = 0x4, scoped, tag = 'scoped memory for tpu_custom_call.1']
    #allocation7 [shape = 'u8[8192]{0}', space=vmem, size = 0x2000, scoped, tag = 'output window, operand 0, single buffered']
    %7 = vsyncpa [#allocation3], 0
    %8 = vsyncpa [#allocation6], 0
    %9 = vsyncpa [#allocation4], 0
    // Predicated region
    $region2: #{tpu_custom_call.1} parent=1 // pred_check
      _
    $region3: #{tpu_custom_call.1} parent=1 // pred_check_branch
      %11 = sbr.rel (0) target = $region5
    $region4: #{tpu_custom_call.1} parent=1 // pred_region
      %s13 = ssub.s32 256, 256
      %14 = vsyncadd [#allocation3], %s13
      %s15 = sshll.u32 [#allocation2], 4
      %s16 = int_to_ptr.vmem [resolvable:$true] %s15
      %21 = dma.hbm_to_vmem [thread:$0]  %s0, 256, %s16, [#allocation3], 128, 128, 8
    $region5: #{tpu_custom_call.1} parent=1 // pred_fallthru
      _
    // Predicated region
    $region6: #{tpu_custom_call.1} parent=1 // pred_check
      _
    $region7: #{tpu_custom_call.1} parent=1 // pred_check_branch
      %23 = sbr.rel (0) target = $region9
    $region8: #{tpu_custom_call.1} parent=1 // pred_region
      %s25 = ssub.s32 256, 256
      %26 = vsyncadd [#allocation6], %s25
      %s27 = sshll.u32 [#allocation5], 4
      %s28 = int_to_ptr.vmem [resolvable:$true] %s27
      %33 = dma.hbm_to_vmem [thread:$0]  %s1, 256, %s28, [#allocation6], 128, 128, 8
    $region9: #{tpu_custom_call.1} parent=1 // pred_fallthru
      _
    // Predicated region
    $region10: #{tpu_custom_call.1} parent=1 // pred_check
      _
    $region11: #{tpu_custom_call.1} parent=1 // pred_check_branch
      %35 = sbr.rel (0) target = $region13
    $region12: #{tpu_custom_call.1} parent=1 // pred_region
      %36 = dma.done [#allocation3], 256
    $region13: #{tpu_custom_call.1} parent=1 // pred_fallthru
      _
    // Predicated region
    $region14: #{tpu_custom_call.1} parent=1 // pred_check
      _
    $region15: #{tpu_custom_call.1} parent=1 // pred_check_branch
      %38 = sbr.rel (0) target = $region17
    $region16: #{tpu_custom_call.1} parent=1 // pred_region
      %39 = dma.done [#allocation6], 256
    $region17: #{tpu_custom_call.1} parent=1 // pred_fallthru
      _
    %v40 = vld [vmem:[#allocation2] sm:$0xff]
    %v41 = vld [vmem:[#allocation2 + $0x8] sm:$0xff]
    %v42 = vld [vmem:[#allocation5] sm:$0xff]
    %v43 = vld [vmem:[#allocation5 + $0x8] sm:$0xff]
    %v44 = vsub.f32 %v40, %v42
    %v45 = vsub.f32 %v41, %v43
    %46 = vst [vmem:[#allocation7] sm:$0xff] %v44
    %47 = vst [vmem:[#allocation7 + $0x8] sm:$0xff] %v45
    // Predicated region
    $region18: #{tpu_custom_call.1} parent=1 // pred_check
      _
    $region19: #{tpu_custom_call.1} parent=1 // pred_check_branch
      %49 = sbr.rel (0) target = $region21
    $region20: #{tpu_custom_call.1} parent=1 // pred_region
      %s51 = ssub.s32 256, 256
      %52 = vsyncadd [#allocation4], %s51
      %s53 = sshll.u32 [#allocation7], 4
      %s54 = int_to_ptr.vmem [resolvable:$true] %s53
      %59 = dma.vmem_to_hbm [thread:$0]  %s54, 256, %s2, [#allocation4], 128, 128, 8
    $region21: #{tpu_custom_call.1} parent=1 // pred_fallthru
      _
    // Predicated region
    $region22: #{tpu_custom_call.1} parent=1 // pred_check
      _
    $region23: #{tpu_custom_call.1} parent=1 // pred_check_branch
      %61 = sbr.rel (0) target = $region25
    $region24: #{tpu_custom_call.1} parent=1 // pred_region
      %62 = dma.done [#allocation4], 256
    $region25: #{tpu_custom_call.1} parent=1 // pred_fallthru
      _
    %63 = vsyncpa [#allocation3], 1
    %64 = vsyncpa [#allocation6], 1
    %65 = vsyncpa [#allocation4], 1

</llo_original>
